<compile_context>
chip_gen: v7x
topology: tpu7x:2x2x1
jax: 0.10.0
libtpu: 0.0.40
codegen_flags: <defaults>
</compile_context>

<pallas_src>
import jax
import jax.numpy as jnp
from jax.experimental import pallas as pl
from jax.experimental.pallas import tpu as pltpu


def _cdiv(a: int, b: int) -> int:
    return -(-a // b)


def _round_up(x: int, m: int) -> int:
    return _cdiv(x, m) * m


def _lora_kernel(x_ref, at_ref, bt_ref, o_ref, xa_ref):
    # x_ref : (TM, in_features)     -- native input dtype (cast in-kernel)
    # at_ref: (in_features, R_pad)  -- compute dtype, A^T zero-padded in rank
    # bt_ref: (R_pad, TN)           -- compute dtype, (scale * B^T) zero-padded
    # o_ref : (TM, TN)              -- output dtype
    # xa_ref: (TM, R_pad) f32 scratch, carried across the out-tile axis (j).
    @pl.when(pl.program_id(1) == 0)
    def _():
        x = x_ref[...].astype(at_ref.dtype)
        xa_ref[...] = jnp.dot(x, at_ref[...], preferred_element_type=jnp.float32)

    out = jnp.dot(xa_ref[...].astype(bt_ref.dtype), bt_ref[...],
                  preferred_element_type=jnp.float32)
    o_ref[...] = out.astype(o_ref.dtype)


def lora_forward(x, lora_A, lora_B, alpha: float, *,
                 compute_dtype=None, tm: int | None = None, tn: int | None = None):
    """Pallas LoRA forward: scale * (x @ A.T) @ B.T (PyTorch-shape weights in)."""
    batch, in_features = x.shape
    rank, in_features_a = lora_A.shape
    out_features, rank_b = lora_B.shape
    assert in_features == in_features_a and rank == rank_b
    scale = alpha / rank

    out_dtype = x.dtype
    if compute_dtype is None:
        compute_dtype = x.dtype  # pass jnp.bfloat16 here for bandwidth-bound prod use
    compute_dtype = jnp.dtype(compute_dtype)

    # ---- Hardware-aware VMEM budget (v7x: 64 MiB/TC, v5e/v6e: 128 MiB) --------
    try:
        vmem_cap = int(pltpu.get_tpu_info().vmem_capacity_bytes)
    except Exception:
        vmem_cap = 64 << 20  # conservative fallback
    vmem_budget = (vmem_cap * 3) // 4          # keep headroom for compiler scratch

    # ---- Tile defaults (smaller row tile on 64 MiB-VMEM parts) ----------------
    if tm is None:
        tm = 128 if vmem_cap <= (64 << 20) else 256
    if tn is None:
        tn = 512 if vmem_cap <= (64 << 20) else 1024

    r_pad = _round_up(max(rank, 1), 128)       # lane-aligned rank (exact: zero pad)

    # ---- One-time weight layout (transpose + zero-pad rank + fold scale) ------
    a_t = jnp.pad(lora_A.T.astype(compute_dtype),
                  ((0, 0), (0, r_pad - rank)))                  # (in, R_pad)
    b_t = jnp.pad((lora_B.T * scale).astype(compute_dtype),
                  ((0, r_pad - rank), (0, 0)))                  # (R_pad, out)

    # ---- Single-buffer A^T (constant index_map) when it is worth it -----------
    _a_map = lambda i, j: (0, 0)
    a_bytes = in_features * r_pad * compute_dtype.itemsize
    a_spec = None
    use_single_buffer_a = hasattr(pl, "Buffered") and a_bytes >= (2 << 20)
    if use_single_buffer_a:
        try:
            a_spec = pl.BlockSpec((in_features, r_pad), _a_map,
                                  pipeline_mode=pl.Buffered(1))
        except TypeError:
            a_spec, use_single_buffer_a = None, False
    if a_spec is None:
        a_spec = pl.BlockSpec((in_features, r_pad), _a_map)
    n_a_buffers = 1 if use_single_buffer_a else 2

    # ---- Tile sizing with correct double-buffer accounting --------------------
    def _vmem_bytes(tm_e, tn_e):
        return (2 * tm_e * in_features * x.dtype.itemsize          # x (2 bufs)
                + n_a_buffers * a_bytes                            # A^T
                + 2 * r_pad * tn_e * compute_dtype.itemsize        # B^T tile (2 bufs)
                + 2 * tm_e * tn_e * jnp.dtype(out_dtype).itemsize  # out tile (2 bufs)
                + tm_e * r_pad * 4)                                # xa f32 scratch

    tm_eff = min(tm, batch)
    tn_eff = min(tn, out_features)
    while _vmem_bytes(tm_eff, tn_eff) > vmem_budget and tm_eff > 8:
        tm_eff = max(8, _round_up(tm_eff // 2, 8))
    while _vmem_bytes(tm_eff, tn_eff) > vmem_budget and tn_eff > 128:
        tn_eff = max(128, _round_up(tn_eff // 2, 128))
    # NOTE: for in_features so large that even tm=8 overflows, a nested K-tiled
    # pltpu.emit_pipeline over in_features chunks would be the next step.

    grid = (_cdiv(batch, tm_eff), _cdiv(out_features, tn_eff))

    # ---- Compiler params: always set vmem_limit (v5e default is only 16 MiB) --
    tile_vmem = _vmem_bytes(tm_eff, tn_eff)
    vmem_limit = int(min(max(tile_vmem * 3 // 2, 32 << 20), (vmem_cap * 7) // 8))
    compiler_params = pltpu.CompilerParams(
        dimension_semantics=("parallel", "arbitrary"),
        vmem_limit_bytes=vmem_limit,
    )

    # ---- Cost estimate reflecting actual (rank-padded, cached-xa) MXU work ----
    cost = pl.CostEstimate(
        flops=2 * batch * in_features * r_pad + 2 * batch * r_pad * out_features,
        transcendentals=0,
        bytes_accessed=int(x.size * x.dtype.itemsize
                           + a_t.size * compute_dtype.itemsize
                           + b_t.size * compute_dtype.itemsize * grid[0]
                           + batch * out_features * jnp.dtype(out_dtype).itemsize),
    )

    return pl.pallas_call(
        _lora_kernel,
        out_shape=jax.ShapeDtypeStruct((batch, out_features), out_dtype),
        grid=grid,
        in_specs=[
            pl.BlockSpec((tm_eff, in_features), lambda i, j: (i, 0)),
            a_spec,
            pl.BlockSpec((r_pad, tn_eff), lambda i, j: (0, j)),
        ],
        out_specs=pl.BlockSpec((tm_eff, tn_eff), lambda i, j: (i, j)),
        scratch_shapes=[pltpu.VMEM((tm_eff, r_pad), jnp.float32)],
        compiler_params=compiler_params,
        cost_estimate=cost,
    )(x, a_t, b_t)


def lora_reference(x, lora_A, lora_B, alpha: float):
    scale = alpha / lora_A.shape[0]
    return scale * (lora_B @ (lora_A @ x.T)).T


if __name__ == "__main__":
    key = jax.random.PRNGKey(0)
    k_x, k_a, k_b = jax.random.split(key, 3)

    batch = 8
    in_features = 32
    out_features = 32
    rank = 4
    alpha = 1.0

    x = jax.random.normal(k_x, (batch, in_features), dtype=jnp.float32)

    # Faithful to LoRALayer.__init__: A ~ 0.02 * N(0,1), B = zeros.
    lora_A = 0.02 * jax.random.normal(k_a, (rank, in_features), dtype=jnp.float32)
    lora_B = jnp.zeros((out_features, rank), dtype=jnp.float32)

    out = jax.block_until_ready(lora_forward(x, lora_A, lora_B, alpha))
    ref = lora_reference(x, lora_A, lora_B, alpha)
    assert out.shape == ref.shape
    assert jnp.allclose(out, ref, atol=1e-6), "mismatch with B=zeros init"

    # Nontrivial numerical check with a random B (same shapes as __init__).
    # Tolerance accounts for TPU default matmul precision on both sides.
    lora_B_rand = 0.02 * jax.random.normal(k_b, (out_features, rank), dtype=jnp.float32)
    out2 = jax.block_until_ready(lora_forward(x, lora_A, lora_B_rand, alpha))
    ref2 = lora_reference(x, lora_A, lora_B_rand, alpha)
    assert jnp.allclose(out2, ref2, atol=2e-4, rtol=2e-2), "mismatch with random B"

    # bf16 production path (in-kernel cast, f32 MXU accumulation), relaxed tol.
    out3 = jax.block_until_ready(
        lora_forward(x, lora_A, lora_B_rand, alpha, compute_dtype=jnp.bfloat16))
    assert jnp.allclose(out3, ref2, atol=2e-2, rtol=2e-2), "bf16 path mismatch"

    print("KERNEL_OK")
</pallas_src>

<mosaic_0001>
module attributes {stable_mosaic.version = 11 : i64} {
  func.func @_lora_kernel(%arg0: i32, %arg1: i32, %arg2: memref<8x32xf32, #tpu.memory_space<vmem>>, %arg3: memref<32x128xf32, #tpu.memory_space<vmem>>, %arg4: memref<128x32xf32, #tpu.memory_space<vmem>>, %arg5: memref<8x32xf32, #tpu.memory_space<vmem>>, %arg6: memref<8x128xf32, #tpu.memory_space<vmem>>) attributes {dimension_semantics = [#tpu.dimension_semantics<parallel>, #tpu.dimension_semantics<arbitrary>], iteration_bounds = array<i64: 1, 1>, scalar_prefetch = 0 : i64, scratch_operands = 1 : i64, tpu.core_type = #tpu.core_type<tc>, window_params = [{transform_indices = @transform_0, window_bounds = array<i64: 8, 32>}, {pipeline_mode = #tpu.pipeline_mode<synchronous>, transform_indices = @transform_1, window_bounds = array<i64: 32, 128>}, {transform_indices = @transform_2, window_bounds = array<i64: 128, 32>}, {transform_indices = @transform_3, window_bounds = array<i64: 8, 32>}]} {
    %c0_i32 = arith.constant 0 : i32
    %0 = arith.cmpi eq, %arg1, %c0_i32 : i32
    %1 = arith.extui %0 : i1 to i32
    %c0_i32_0 = arith.constant 0 : i32
    %2 = arith.cmpi ne, %1, %c0_i32_0 : i32
    scf.if %2 {
      %c0_6 = arith.constant 0 : index
      %c0_7 = arith.constant 0 : index
      %7 = vector.load %arg2[%c0_6, %c0_7] : memref<8x32xf32, #tpu.memory_space<vmem>>, vector<8x32xf32>
      %c0_8 = arith.constant 0 : index
      %c0_9 = arith.constant 0 : index
      %8 = vector.load %arg3[%c0_8, %c0_9] : memref<32x128xf32, #tpu.memory_space<vmem>>, vector<32x128xf32>
      %cst_10 = arith.constant dense<0.000000e+00> : vector<8x128xf32>
      %9 = tpu.matmul %7, %8, %cst_10 {dimension_numbers = #tpu.dot_dimension_numbers<[1], [0], [0], [1], [0, 0, 1, 1], [], []>} : vector<8x32xf32>, vector<32x128xf32>, vector<8x128xf32> -> vector<8x128xf32>
      %c0_11 = arith.constant 0 : index
      %c0_12 = arith.constant 0 : index
      %10 = vector.load %arg6[%c0_11, %c0_12] : memref<8x128xf32, #tpu.memory_space<vmem>>, vector<8x128xf32>
      tpu.vector_store %arg6[%c0_11, %c0_12], %9 {strides = array<i32>} : memref<8x128xf32, #tpu.memory_space<vmem>>, vector<8x128xf32>,
    } else {
    }
    %c0 = arith.constant 0 : index
    %c0_1 = arith.constant 0 : index
    %3 = vector.load %arg6[%c0, %c0_1] : memref<8x128xf32, #tpu.memory_space<vmem>>, vector<8x128xf32>
    %c0_2 = arith.constant 0 : index
    %c0_3 = arith.constant 0 : index
    %4 = vector.load %arg4[%c0_2, %c0_3] : memref<128x32xf32, #tpu.memory_space<vmem>>, vector<128x32xf32>
    %cst = arith.constant dense<0.000000e+00> : vector<8x32xf32>
    %5 = tpu.matmul %3, %4, %cst {dimension_numbers = #tpu.dot_dimension_numbers<[1], [0], [0], [1], [0, 0, 1, 1], [], []>} : vector<8x128xf32>, vector<128x32xf32>, vector<8x32xf32> -> vector<8x32xf32>
    %c0_4 = arith.constant 0 : index
    %c0_5 = arith.constant 0 : index
    %6 = vector.load %arg5[%c0_4, %c0_5] : memref<8x32xf32, #tpu.memory_space<vmem>>, vector<8x32xf32>
    tpu.vector_store %arg5[%c0_4, %c0_5], %5 {strides = array<i32>} : memref<8x32xf32, #tpu.memory_space<vmem>>, vector<8x32xf32>,
    return
  }
  func.func @transform_0(%arg0: i32, %arg1: i32) -> (i32, i32) {
    %c0_i32 = arith.constant 0 : i32
    %c0_i32_0 = arith.constant 0 : i32
    return %arg0, %c0_i32 : i32, i32
  }
  func.func @transform_1(%arg0: i32, %arg1: i32) -> (i32, i32) {
    %c0_i32 = arith.constant 0 : i32
    %c0_i32_0 = arith.constant 0 : i32
    %c0_i32_1 = arith.constant 0 : i32
    return %c0_i32, %c0_i32_0 : i32, i32
  }
  func.func @transform_2(%arg0: i32, %arg1: i32) -> (i32, i32) {
    %c0_i32 = arith.constant 0 : i32
    %c0_i32_0 = arith.constant 0 : i32
    return %c0_i32, %arg1 : i32, i32
  }
  func.func @transform_3(%arg0: i32, %arg1: i32) -> (i32, i32) {
    %c0_i32 = arith.constant 0 : i32
    return %arg0, %arg1 : i32, i32
  }
}

</mosaic_0001>

<llo_original>
// kernel: tpu_custom_call.1
$region0: #{tpu_custom_call.1}
  #allocation0 [shape = 'u32[]', space=smem, size = 0x4, offset = 0x4, fixed_abs, tag = 'smem constant byte address 0x4 - core index']
  #allocation1 [shape = 'u32[144,128]{1,0:T(1,128)}', space=vmem, size = 0x12000, scoped, tag = 'internal scratch']
  #allocation2 [shape = 'f32[8,128]{1,0:T(8,128)}', space=vmem, size = 0x1000, scoped, tag = 'scratch operand']
  %s0 = inlined_call_operand.vmem [shape: f32[8,32], index: 0, kind: input, shape index: {}]
  %s1 = inlined_call_operand.vmem [shape: f32[32,128], index: 1, kind: input, shape index: {}]
  %s2 = inlined_call_operand.vmem [shape: f32[128,32], index: 2, kind: input, shape index: {}]
  %s3 = inlined_call_operand.hbm [shape: f32[8,32], index: 3, kind: output, shape index: {}]
  %s4 = sld [smem:[#allocation0]]
  $region26: #{tpu_custom_call.1} parent=0
    _
  %s6 = ssub.s32 1, %s4
  %s7 = scalar_select 0, %s6, %s4
  $region1: #{tpu_custom_call.1} parent=0
    #allocation3 [shape = 'u8[4096]{0}', space=vmem, size = 0x1000, scoped, tag = 'output window, operand 0, single buffered']
    #allocation4 [shape = 's32[1]{0}', space=sflag, size = 0x4, scoped, tag = 'scoped memory for tpu_custom_call.1']
    %8 = vsyncpa [#allocation4], 0
    // Predicated region
    $region2: #{tpu_custom_call.1} parent=1 // pred_check
      _
    $region3: #{tpu_custom_call.1} parent=1 // pred_check_branch
      %10 = sbr.rel (0) target = $region5
    $region4: #{tpu_custom_call.1} parent=1 // pred_region
      _
    $region5: #{tpu_custom_call.1} parent=1 // pred_fallthru
      _
    // Predicated region
    $region6: #{tpu_custom_call.1} parent=1 // pred_check
      _
    $region7: #{tpu_custom_call.1} parent=1 // pred_check_branch
      %12 = sbr.rel (0) target = $region9
    $region8: #{tpu_custom_call.1} parent=1 // pred_region
      _
    $region9: #{tpu_custom_call.1} parent=1 // pred_fallthru
      _
    // Predicated region
    $region10: #{tpu_custom_call.1} parent=1 // pred_check
      _
    $region11: #{tpu_custom_call.1} parent=1 // pred_check_branch
      %14 = sbr.rel (0) target = $region13
    $region12: #{tpu_custom_call.1} parent=1 // pred_region
      _
    $region13: #{tpu_custom_call.1} parent=1 // pred_fallthru
      _
    %p15 = scmp.eq.s32.totalorder 0, 0
    // Predicated region
    $region14: #{tpu_custom_call.1} parent=1 // pred_check
      %p16 = pneg %p15
    $region15: #{tpu_custom_call.1} parent=1 // pred_check_branch
      %18 = sbr.rel (%p16) target = $region17
    $region16: #{tpu_custom_call.1} parent=1 // pred_region
      %v19 = vld [vmem:[%s0] sm:$0xff]
      %v20 = vld [vmem:[%s1] sm:$0xff]
      %v21 = vld [vmem:[%s1 + $0x8] sm:$0xff]
      %v22 = vld [vmem:[%s1 + $0x10] sm:$0xff]
      %v23 = vld [vmem:[%s1 + $0x18] sm:$0xff]
      %vm24 = vcmask 261120
      %v26 = vsel %vm24, %v19, 0
      %28 = vmatprep.subr.mxu0 0.0
      %29 = vmatpush1.msra.mxu0 %v20
      %30 = vmatprep.subr.mxu0 0.0
      %31 = vmatpush1.msra.mxu0 %v21
      %32 = vmatprep.subr.mxu0 0.0
      %33 = vmatpush1.msra.mxu0 %v22
      %34 = vmatprep.subr.mxu0 0.0
      %35 = vmatpush1.msra.mxu0 %v23
      %36 = vmatprep.subr.mxu0 0.0
      %37 = vmatpush1.msra.mxu0 0.0
      %38 = vmatprep.subr.mxu0 0.0
      %39 = vmatpush1.msra.mxu0 0.0
      %40 = vmatprep.subr.mxu0 0.0
      %41 = vmatpush1.msra.mxu0 0.0
      %42 = vmatprep.subr.mxu0 0.0
      %43 = vmatpush1.msra.mxu0 0.0
      %44 = vmatprep.subr.mxu0 0.0
      %45 = vmatpush1.msra.mxu0 0.0
      %46 = vmatprep.subr.mxu0 0.0
      %47 = vmatpush1.msra.mxu0 0.0
      %48 = vmatprep.subr.mxu0 0.0
      %49 = vmatpush1.msra.mxu0 0.0
      %50 = vmatprep.subr.mxu0 0.0
      %51 = vmatpush1.msra.mxu0 0.0
      %52 = vmatprep.subr.mxu0 0.0
      %53 = vmatpush1.msra.mxu0 0.0
      %54 = vmatprep.subr.mxu0 0.0
      %55 = vmatpush1.msra.mxu0 0.0
      %56 = vmatprep.subr.mxu0 0.0
      %57 = vmatpush1.msra.mxu0 0.0
      %58 = vmatprep.subr.mxu0 0.0
      %59 = vmatpush1.msra.mxu0 0.0
      %60 = vmatprep.subr.mxu0 0.0
      %61 = vmatpush1.msra.mxu0 0.0
      %62 = vmatprep.subr.mxu0 0.0
      %63 = vmatpush1.msra.mxu0 0.0
      %64 = vmatprep.subr.mxu0 0.0
      %65 = vmatpush1.msra.mxu0 0.0
      %66 = vmatprep.subr.mxu0 0.0
      %67 = vmatpush1.msra.mxu0 0.0
      %68 = vmatprep.subr.mxu0 0.0
      %69 = vmatpush1.msra.mxu0 0.0
      %70 = vmatprep.subr.mxu0 0.0
      %71 = vmatpush1.msra.mxu0 0.0
      %72 = vmatprep.subr.mxu0 0.0
      %73 = vmatpush1.msra.mxu0 0.0
      %74 = vmatprep.subr.mxu0 0.0
      %75 = vmatpush1.msra.mxu0 0.0
      %76 = vmatprep.subr.mxu0 0.0
      %77 = vmatpush1.msra.mxu0 0.0
      %78 = vmatprep.subr.mxu0 0.0
      %79 = vmatpush1.msra.mxu0 0.0
      %80 = vmatprep.subr.mxu0 0.0
      %81 = vmatpush1.msra.mxu0 0.0
      %82 = vmatprep.subr.mxu0 0.0
      %83 = vmatpush1.msra.mxu0 0.0
      %84 = vmatprep.subr.mxu0 0.0
      %85 = vmatpush1.msra.mxu0 0.0
      %86 = vmatprep.subr.mxu0 0.0
      %87 = vmatpush1.msra.mxu0 0.0
      %88 = vmatprep.subr.mxu0 0.0
      %89 = vmatpush1.msra.mxu0 0.0
      %90 = vmatprep.subr.mxu0 0.0
      %91 = vmatpush1.msra.mxu0 0.0
      %92 = vmatprep.mubr.f32.mxu0 0.0
      %93 = vmatmul.mubr.f32.gmra.mrb[0].mxu0 %v26
      %v94 = vpop.f32.mrb[0].mxu0
      %v95 = vadd.f32 0.0, %v94
      %v96 = vpop.f32.mrb[0].mxu0
      %97 = vdwg.mxu0
      %98 = vst [vmem:[#allocation2] sm:$0xff] %v95
    $region17: #{tpu_custom_call.1} parent=1 // pred_fallthru
      _
    %v99 = vld [vmem:[#allocation2] sm:$0xff]
    %v100 = vld [vmem:[%s2] sm:$0xff]
    %v101 = vld [vmem:[%s2 + $0x8] sm:$0xff]
    %v102 = vld [vmem:[%s2 + $0x10] sm:$0xff]
    %v103 = vld [vmem:[%s2 + $0x18] sm:$0xff]
    %v104 = vld [vmem:[%s2 + $0x20] sm:$0xff]
    %v105 = vld [vmem:[%s2 + $0x28] sm:$0xff]
    %v106 = vld [vmem:[%s2 + $0x30] sm:$0xff]
    %v107 = vld [vmem:[%s2 + $0x38] sm:$0xff]
    %v108 = vld [vmem:[%s2 + $0x40] sm:$0xff]
    %v109 = vld [vmem:[%s2 + $0x48] sm:$0xff]
    %v110 = vld [vmem:[%s2 + $0x50] sm:$0xff]
    %v111 = vld [vmem:[%s2 + $0x58] sm:$0xff]
    %v112 = vld [vmem:[%s2 + $0x60] sm:$0xff]
    %v113 = vld [vmem:[%s2 + $0x68] sm:$0xff]
    %v114 = vld [vmem:[%s2 + $0x70] sm:$0xff]
    %v115 = vld [vmem:[%s2 + $0x78] sm:$0xff]
    %116 = vmatprep.subr.mxu0 0.0
    %117 = vmatpush1.msra.mxu0 %v100
    %118 = vmatprep.subr.mxu0 0.0
    %119 = vmatpush1.msra.mxu0 %v101
    %120 = vmatprep.subr.mxu0 0.0
    %121 = vmatpush1.msra.mxu0 %v102
    %122 = vmatprep.subr.mxu0 0.0
    %123 = vmatpush1.msra.mxu0 %v103
    %124 = vmatprep.subr.mxu0 0.0
    %125 = vmatpush1.msra.mxu0 %v104
    %126 = vmatprep.subr.mxu0 0.0
    %127 = vmatpush1.msra.mxu0 %v105
    %128 = vmatprep.subr.mxu0 0.0
    %129 = vmatpush1.msra.mxu0 %v106
    %130 = vmatprep.subr.mxu0 0.0
    %131 = vmatpush1.msra.mxu0 %v107
    %132 = vmatprep.subr.mxu0 0.0
    %133 = vmatpush1.msra.mxu0 %v108
    %134 = vmatprep.subr.mxu0 0.0
    %135 = vmatpush1.msra.mxu0 %v109
    %136 = vmatprep.subr.mxu0 0.0
    %137 = vmatpush1.msra.mxu0 %v110
    %138 = vmatprep.subr.mxu0 0.0
    %139 = vmatpush1.msra.mxu0 %v111
    %140 = vmatprep.subr.mxu0 0.0
    %141 = vmatpush1.msra.mxu0 %v112
    %142 = vmatprep.subr.mxu0 0.0
    %143 = vmatpush1.msra.mxu0 %v113
    %144 = vmatprep.subr.mxu0 0.0
    %145 = vmatpush1.msra.mxu0 %v114
    %146 = vmatprep.subr.mxu0 0.0
    %147 = vmatpush1.msra.mxu0 %v115
    %148 = vmatprep.subr.mxu0 0.0
    %149 = vmatpush1.msra.mxu0 0.0
    %150 = vmatprep.subr.mxu0 0.0
    %151 = vmatpush1.msra.mxu0 0.0
    %152 = vmatprep.subr.mxu0 0.0
    %153 = vmatpush1.msra.mxu0 0.0
    %154 = vmatprep.subr.mxu0 0.0
    %155 = vmatpush1.msra.mxu0 0.0
    %156 = vmatprep.subr.mxu0 0.0
    %157 = vmatpush1.msra.mxu0 0.0
    %158 = vmatprep.subr.mxu0 0.0
    %159 = vmatpush1.msra.mxu0 0.0
    %160 = vmatprep.subr.mxu0 0.0
    %161 = vmatpush1.msra.mxu0 0.0
    %162 = vmatprep.subr.mxu0 0.0
    %163 = vmatpush1.msra.mxu0 0.0
    %164 = vmatprep.subr.mxu0 0.0
    %165 = vmatpush1.msra.mxu0 0.0
    %166 = vmatprep.subr.mxu0 0.0
    %167 = vmatpush1.msra.mxu0 0.0
    %168 = vmatprep.subr.mxu0 0.0
    %169 = vmatpush1.msra.mxu0 0.0
    %170 = vmatprep.subr.mxu0 0.0
    %171 = vmatpush1.msra.mxu0 0.0
    %172 = vmatprep.subr.mxu0 0.0
    %173 = vmatpush1.msra.mxu0 0.0
    %174 = vmatprep.subr.mxu0 0.0
    %175 = vmatpush1.msra.mxu0 0.0
    %176 = vmatprep.subr.mxu0 0.0
    %177 = vmatpush1.msra.mxu0 0.0
    %178 = vmatprep.subr.mxu0 0.0
    %179 = vmatpush1.msra.mxu0 0.0
    %180 = vmatprep.mubr.f32.mxu0 0.0
    %181 = vmatmul.mubr.f32.gmra.mrb[0].mxu0 %v99
    %v182 = vpop.f32.mrb[0].mxu0
    %v183 = vadd.f32 0.0, %v182
    %v184 = vpop.f32.mrb[0].mxu0
    %185 = vdwg.mxu0
    %vm186 = vcmask 261120
    %187 = vst.msk [vmem:[#allocation3] sm:$0xff] %vm186, %v183
    // Predicated region
    $region18: #{tpu_custom_call.1} parent=1 // pred_check
      _
    $region19: #{tpu_custom_call.1} parent=1 // pred_check_branch
      %189 = sbr.rel (0) target = $region21
    $region20: #{tpu_custom_call.1} parent=1 // pred_region
      %s191 = ssub.s32 128, 128
      %192 = vsyncadd [#allocation4], %s191
      %s194 = sshll.u32 [#allocation3], 4
      %s195 = int_to_ptr.vmem [resolvable:$true] %s194
      %197 = dma.vmem_to_hbm [thread:$0]  %s195, 128, %s3, [#allocation4]
    $region21: #{tpu_custom_call.1} parent=1 // pred_fallthru
      _
    // Predicated region
    $region22: #{tpu_custom_call.1} parent=1 // pred_check
      _
    $region23: #{tpu_custom_call.1} parent=1 // pred_check_branch
      %199 = sbr.rel (0) target = $region25
    $region24: #{tpu_custom_call.1} parent=1 // pred_region
      %200 = dma.done [#allocation4], 128
    $region25: #{tpu_custom_call.1} parent=1 // pred_fallthru
      _
    %201 = vsyncpa [#allocation4], 1

</llo_original>
